<compile_context>
chip_gen: v5e
topology: v5e:2x2
jax: 0.10.0
libtpu: 0.0.40
codegen_flags: <defaults>
</compile_context>

<pallas_src>
import functools
import math

import jax
import jax.numpy as jnp
from jax import lax
from jax.experimental import pallas as pl
from jax.experimental.pallas import tpu as pltpu

LN_EPS = 1e-12  # BERT LayerNorm eps

# TODO(synk): BertTokenizer (string -> ids) has no Pallas equivalent; inputs are
# pre-tokenized input_ids + attention_mask.


# ----------------------------- device-aware knobs -----------------------------

@functools.lru_cache(maxsize=None)
def _vmem_limit_bytes():
    # ~75% of physical VMEM: v5e/v6e 128 MiB -> ~96 MiB, v7x 64 MiB -> 48 MiB.
    try:
        return int(pltpu.get_tpu_info().vmem_capacity_bytes) * 3 // 4
    except Exception:
        pass
    try:
        kind = jax.devices()[0].device_kind.lower()
        return (48 << 20) if "v7" in kind else (96 << 20)
    except Exception:
        return 48 << 20


@functools.lru_cache(maxsize=None)
def _use_bf16_exp():
    # v5e's EUP has no bf16 -> keep f32 exp there; bf16 exp on v6e/v7x.
    try:
        kind = jax.devices()[0].device_kind.lower()
        return "v5" not in kind
    except Exception:
        return False


def _pick_heads_per_group(num_heads, head_dim):
    # Smallest divisor of num_heads whose group width is a multiple of 128 lanes.
    for d in range(1, num_heads + 1):
        if num_heads % d == 0 and (d * head_dim) % 128 == 0:
            return d
    return num_heads  # fallback: single group


# ----------------------------- in-kernel helpers ------------------------------

def _layernorm(x, gamma, beta):
    # x f32 (rows, H); gamma/beta f32 (1, H). Stats kept in f32.
    mu = jnp.mean(x, axis=-1, keepdims=True)
    xc = x - mu
    var = jnp.mean(xc * xc, axis=-1, keepdims=True)
    inv = lax.rsqrt(var + LN_EPS)
    return xc * inv * gamma + beta


def _gelu_exact(x):
    # HF BERT "gelu" is the exact erf form.
    return 0.5 * x * (1.0 + lax.erf(x * (1.0 / math.sqrt(2.0))))


# --------------------------------- kernels ------------------------------------

def embed_ln_kernel(x_ref, g_ref, b_ref, o_ref):
    # x: (S_tile, H) bf16; g/b: (1, H) f32 -> o: (S_tile, H) bf16 (f32 stats).
    o_ref[...] = _layernorm(x_ref[...].astype(jnp.float32),
                            g_ref[...], b_ref[...]).astype(o_ref.dtype)


def encoder_layer_kernel(num_heads, heads_per_group, exp_bf16,
                         x_ref, maskb_ref,
                         wqkv_ref, bqkv_ref, wo_ref, bo_ref, g1_ref, be1_ref,
                         w1_ref, b1_ref, w2_ref, b2_ref, g2_ref, be2_ref,
                         o_ref,
                         q_scr, k_scr, v_scr, ctx_scr):
    # Grid: (batch,). Full fused layer per batch element; all weights resident.
    S, H = x_ref.shape
    hd = H // num_heads
    group_w = heads_per_group * hd
    n_groups = num_heads // heads_per_group

    x_bf = x_ref[...]                               # (S, H) bf16
    x_f32 = x_bf.astype(jnp.float32)
    bias = maskb_ref[...]                           # (1, S) f32 additive mask

    # Fused QKV projection (attention scale already folded into wq/bq).
    qkv = (jnp.dot(x_bf, wqkv_ref[...], preferred_element_type=jnp.float32)
           + bqkv_ref[...])                          # (S, 3H) f32

    # Spill q/k/v grouped by head-group so the fori_loop can index the leading dim.
    for g in range(n_groups):                        # static: cheap stores only
        base = g * group_w
        q_scr[g] = qkv[:, base:base + group_w].astype(jnp.bfloat16)
        k_scr[g] = qkv[:, H + base:H + base + group_w].astype(jnp.bfloat16)
        v_scr[g] = qkv[:, 2 * H + base:2 * H + base + group_w].astype(jnp.bfloat16)

    def group_body(g, carry):
        qg = q_scr[g]                                # (S, group_w) bf16
        kg = k_scr[g]
        vg = v_scr[g]
        parts = []
        for hh in range(heads_per_group):            # tiny static loop (e.g. 2)
            sl = slice(hh * hd, (hh + 1) * hd)
            # scores: contract last dims of both operands (no explicit transpose).
            s = lax.dot_general(qg[:, sl], kg[:, sl], (((1,), (1,)), ((), ())),
                                preferred_element_type=jnp.float32)   # (S, S) f32
            s = s + bias
            m = jnp.max(s, axis=-1, keepdims=True)
            z = s - m
            if exp_bf16:
                e = jnp.exp(z.astype(jnp.bfloat16)).astype(jnp.float32)
            else:
                e = jnp.exp(z)
            p = (e * pl.reciprocal(jnp.sum(e, axis=-1, keepdims=True), approx=True)
                 ).astype(jnp.bfloat16)
            parts.append(jnp.dot(p, vg[:, sl],
                                 preferred_element_type=jnp.float32))  # (S, hd)
        ctx_g = (parts[0] if heads_per_group == 1
                 else jnp.concatenate(parts, axis=-1))                 # (S, group_w)
        ctx_scr[g] = ctx_g.astype(jnp.bfloat16)      # full-lane-width store
        return carry

    lax.fori_loop(0, n_groups, group_body, 0, unroll=False)

    # Output projection, accumulated per head group with static slices of wo.
    attn = jnp.zeros((S, H), jnp.float32)
    for g in range(n_groups):
        wo_g = wo_ref[g * group_w:(g + 1) * group_w, :]                # (group_w, H)
        attn = attn + jnp.dot(ctx_scr[g], wo_g,
                              preferred_element_type=jnp.float32)

    h1 = _layernorm(x_f32 + attn + bo_ref[...], g1_ref[...], be1_ref[...])  # f32
    h1_bf = h1.astype(jnp.bfloat16)

    # FFN with fully resident weights (no chunk streaming).
    ff = _gelu_exact(jnp.dot(h1_bf, w1_ref[...],
                             preferred_element_type=jnp.float32) + b1_ref[...])
    h2 = h1 + b2_ref[...] + jnp.dot(ff.astype(jnp.bfloat16), w2_ref[...],
                                    preferred_element_type=jnp.float32)

    rows = o_ref.shape[0]        # S normally; 1 for the last layer (CLS row only)
    o_ref[...] = _layernorm(h2[:rows, :], g2_ref[...], be2_ref[...]).astype(o_ref.dtype)


def classifier_kernel(cls_ref, w_ref, b_ref, o_ref):
    # cls: (B, H) bf16, w: (1, H) f32, b: (1, 1) f32 -> (B, 1) f32.
    # VPU reduction instead of a degenerate (H, 1) MXU matmul.
    cls = cls_ref[...].astype(jnp.float32)
    o_ref[...] = jnp.sum(cls * w_ref[...], axis=-1, keepdims=True) + b_ref[...]


# --------------------------------- wrappers ------------------------------------

def embed_layernorm(x, gamma, beta):
    B, S, H = x.shape
    s_tile = min(S, 256)
    if S % s_tile:
        s_tile = S
    return pl.pallas_call(
        embed_ln_kernel,
        out_shape=jax.ShapeDtypeStruct((B, S, H), jnp.bfloat16),
        grid=(B, S // s_tile),
        in_specs=[
            pl.BlockSpec((None, s_tile, H), lambda b, s: (b, s, 0)),
            pl.BlockSpec((1, H), lambda b, s: (0, 0),
                         pipeline_mode=pl.Buffered(buffer_count=1)),
            pl.BlockSpec((1, H), lambda b, s: (0, 0),
                         pipeline_mode=pl.Buffered(buffer_count=1)),
        ],
        out_specs=pl.BlockSpec((None, s_tile, H), lambda b, s: (b, s, 0)),
        compiler_params=pltpu.CompilerParams(
            dimension_semantics=("parallel", "parallel"),
            vmem_limit_bytes=_vmem_limit_bytes()),
    )(x, gamma, beta)


_LAYER_PARAM_ORDER = ("wqkv", "bqkv", "wo", "bo", "ln1_g", "ln1_b",
                      "w1", "b1", "w2", "b2", "ln2_g", "ln2_b")


def encoder_layer(x, mask_bias, lp, num_heads, cls_only=False):
    B, S, H = x.shape
    hd = H // num_heads
    hpg = _pick_heads_per_group(num_heads, hd)
    n_groups = num_heads // hpg
    group_w = hpg * hd
    out_rows = 1 if cls_only else S

    # TODO(synk): on v7x with B == 1 only one TensorCore gets work; a seq-tile or
    # head-group "parallel" grid axis would be needed to use both cores.
    # TODO(synk): cross-pallas_call weight prefetch (P10) would hide each layer's
    # prologue weight DMA on v5e; not implemented here.

    def const_spec(shape):
        nd = len(shape)
        return pl.BlockSpec(shape, lambda b, _nd=nd: (0,) * _nd,
                            pipeline_mode=pl.Buffered(buffer_count=1))

    in_specs = [
        pl.BlockSpec((None, S, H), lambda b: (b, 0, 0)),    # x (batch squeezed)
        pl.BlockSpec((None, 1, S), lambda b: (b, 0, 0)),    # additive mask bias
    ] + [const_spec(lp[name].shape) for name in _LAYER_PARAM_ORDER]

    return pl.pallas_call(
        functools.partial(encoder_layer_kernel, num_heads, hpg, _use_bf16_exp()),
        out_shape=jax.ShapeDtypeStruct((B, out_rows, H), jnp.bfloat16),
        grid=(B,),
        in_specs=in_specs,
        out_specs=pl.BlockSpec((None, out_rows, H), lambda b: (b, 0, 0)),
        scratch_shapes=[
            pltpu.VMEM((n_groups, S, group_w), jnp.bfloat16),   # q (grouped)
            pltpu.VMEM((n_groups, S, group_w), jnp.bfloat16),   # k (grouped)
            pltpu.VMEM((n_groups, S, group_w), jnp.bfloat16),   # v (grouped)
            pltpu.VMEM((n_groups, S, group_w), jnp.bfloat16),   # ctx (grouped)
        ],
        compiler_params=pltpu.CompilerParams(
            dimension_semantics=("parallel",),
            vmem_limit_bytes=_vmem_limit_bytes()),
    )(x, mask_bias, *[lp[name] for name in _LAYER_PARAM_ORDER])


def classifier_head(cls_hidden, w_fc, b_fc):
    B = cls_hidden.shape[0]
    return pl.pallas_call(
        classifier_kernel,
        out_shape=jax.ShapeDtypeStruct((B, 1), jnp.float32),
    )(cls_hidden, w_fc, b_fc)


def bert_chinese_classifier_forward(params, input_ids, attention_mask, num_heads):
    B, S = input_ids.shape
    # Embeddings (word + position + token_type) -- gather glue in plain JAX.
    # TODO(synk): token_type_ids hard-coded to 0 (single-segment classification).
    positions = jnp.arange(S, dtype=jnp.int32)
    emb = (params["word_emb"][input_ids].astype(jnp.float32)
           + params["pos_emb"][positions][None, :, :].astype(jnp.float32)
           + params["type_emb"][0][None, None, :].astype(jnp.float32)
           ).astype(jnp.bfloat16)                      # bf16 feed -> halves LN HBM read
    x = embed_layernorm(emb, params["emb_ln_g"], params["emb_ln_b"])   # bf16

    # Additive attention-mask bias: 0 for attended tokens, -1e9 for padding (f32).
    mask_bias = ((1.0 - attention_mask.astype(jnp.float32)) * -1e9).reshape(B, 1, S)

    n_layers = len(params["layers"])
    for i, lp in enumerate(params["layers"]):
        x = encoder_layer(x, mask_bias, lp, num_heads,
                          cls_only=(i == n_layers - 1))
    # Last layer emitted only the CLS row: x is (B, 1, H).
    cls_hidden = x[:, 0, :]                           # bert_output[0][:, 0, :]
    return classifier_head(cls_hidden, params["w_fc"], params["b_fc"])


# ------------------------------ parameter prep ---------------------------------

def prepare_params(params, num_heads):
    """One-time prep: fuse Q|K|V weights and fold the 1/sqrt(hd) scale into wq/bq."""
    hidden = params["layers"][0]["wq"].shape[0]
    hd = hidden // num_heads
    scale = 1.0 / math.sqrt(hd)
    out = dict(params)
    new_layers = []
    for lp in params["layers"]:
        wq = (lp["wq"].astype(jnp.float32) * scale).astype(jnp.bfloat16)
        bq = lp["bq"] * scale
        nlp = {
            "wqkv": jnp.concatenate([wq, lp["wk"], lp["wv"]], axis=1),   # (H, 3H) bf16
            "bqkv": jnp.concatenate([bq, lp["bk"], lp["bv"]], axis=1),   # (1, 3H) f32
        }
        for k in ("wo", "bo", "ln1_g", "ln1_b", "w1", "b1", "w2", "b2",
                  "ln2_g", "ln2_b"):
            nlp[k] = lp[k]
        new_layers.append(nlp)
    out["layers"] = new_layers
    return out


def init_params(key, vocab, max_pos, hidden, inter, num_layers):
    ks = iter(jax.random.split(key, 16 + 8 * num_layers))

    def nrm_bf16(shape, scale=0.02):
        return (scale * jax.random.normal(next(ks), shape,
                                          dtype=jnp.float32)).astype(jnp.bfloat16)

    def nrm_f32(shape, scale=0.02):
        return (scale * jax.random.normal(next(ks), shape,
                                          dtype=jnp.float32)).astype(jnp.float32)

    params = {
        "word_emb": nrm_bf16((vocab, hidden)),
        "pos_emb": nrm_bf16((max_pos, hidden)),
        "type_emb": nrm_bf16((2, hidden)),
        "emb_ln_g": jnp.ones((1, hidden), jnp.float32),
        "emb_ln_b": jnp.zeros((1, hidden), jnp.float32),
        "w_fc": nrm_f32((1, hidden)),            # torch fc.weight is (1, hidden)
        "b_fc": jnp.zeros((1, 1), jnp.float32),
        "layers": [],
    }
    for _ in range(num_layers):
        lp = {
            "wq": nrm_bf16((hidden, hidden)), "bq": jnp.zeros((1, hidden), jnp.float32),
            "wk": nrm_bf16((hidden, hidden)), "bk": jnp.zeros((1, hidden), jnp.float32),
            "wv": nrm_bf16((hidden, hidden)), "bv": jnp.zeros((1, hidden), jnp.float32),
            "wo": nrm_bf16((hidden, hidden)), "bo": jnp.zeros((1, hidden), jnp.float32),
            "ln1_g": jnp.ones((1, hidden), jnp.float32),
            "ln1_b": jnp.zeros((1, hidden), jnp.float32),
            "w1": nrm_bf16((hidden, inter)), "b1": jnp.zeros((1, inter), jnp.float32),
            "w2": nrm_bf16((inter, hidden)), "b2": jnp.zeros((1, hidden), jnp.float32),
            "ln2_g": jnp.ones((1, hidden), jnp.float32),
            "ln2_b": jnp.zeros((1, hidden), jnp.float32),
        }
        params["layers"].append(lp)
    return params


# ----------------------------------- main ---------------------------------------

if __name__ == "__main__":
    # Small synthetic config (stand-in for bert-base-chinese: 768 hidden, 12 layers,
    # 12 heads, 3072 intermediate, S=512).
    B, S = 2, 8
    VOCAB, MAX_POS = 100, 16
    HIDDEN, INTER = 128, 256
    NUM_LAYERS, NUM_HEADS = 2, 2   # head_dim=64 -> exercises the paired-head path

    key = jax.random.PRNGKey(0)
    k_param, k_ids = jax.random.split(key)
    params = prepare_params(init_params(k_param, VOCAB, MAX_POS, HIDDEN, INTER,
                                        NUM_LAYERS), NUM_HEADS)

    input_ids = jax.random.randint(k_ids, (B, S), 1, VOCAB, dtype=jnp.int32)
    attention_mask = jnp.array(
        [[1, 1, 1, 1, 1, 1, 1, 1],
         [1, 1, 1, 1, 1, 0, 0, 0]], dtype=jnp.int32)

    logits = bert_chinese_classifier_forward(params, input_ids, attention_mask,
                                             NUM_HEADS)
    logits = jax.block_until_ready(logits)
    assert logits.shape == (B, 1) and logits.dtype == jnp.float32
    assert bool(jnp.all(jnp.isfinite(logits)))
    print("KERNEL_OK")
</pallas_src>

<mosaic_0001>
module attributes {stable_mosaic.version = 11 : i64} {
  func.func @embed_ln_kernel(%arg0: i32, %arg1: i32, %arg2: memref<1x8x128xbf16, #tpu.memory_space<vmem>>, %arg3: memref<1x128xf32, #tpu.memory_space<vmem>>, %arg4: memref<1x128xf32, #tpu.memory_space<vmem>>, %arg5: memref<1x8x128xbf16, #tpu.memory_space<vmem>>) attributes {dimension_semantics = [#tpu.dimension_semantics<parallel>, #tpu.dimension_semantics<parallel>], iteration_bounds = array<i64: 2, 1>, scalar_prefetch = 0 : i64, scratch_operands = 0 : i64, tpu.core_type = #tpu.core_type<tc>, window_params = [{transform_indices = @transform_0, window_bounds = array<i64: 1, 8, 128>}, {pipeline_mode = #tpu.pipeline_mode<synchronous>, transform_indices = @transform_1, window_bounds = array<i64: 1, 128>}, {pipeline_mode = #tpu.pipeline_mode<synchronous>, transform_indices = @transform_2, window_bounds = array<i64: 1, 128>}, {transform_indices = @transform_3, window_bounds = array<i64: 1, 8, 128>}]} {
    %c0 = arith.constant 0 : index
    %c0_0 = arith.constant 0 : index
    %c0_1 = arith.constant 0 : index
    %0 = vector.load %arg2[%c0, %c0_0, %c0_1] : memref<1x8x128xbf16, #tpu.memory_space<vmem>>, vector<1x8x128xbf16>
    %1 = vector.shape_cast %0 : vector<1x8x128xbf16> to vector<8x128xbf16>
    %2 = arith.extf %1 : vector<8x128xbf16> to vector<8x128xf32>
    %c0_2 = arith.constant 0 : index
    %c0_3 = arith.constant 0 : index
    %3 = vector.load %arg3[%c0_2, %c0_3] : memref<1x128xf32, #tpu.memory_space<vmem>>, vector<1x128xf32>
    %c0_4 = arith.constant 0 : index
    %c0_5 = arith.constant 0 : index
    %4 = vector.load %arg4[%c0_4, %c0_5] : memref<1x128xf32, #tpu.memory_space<vmem>>, vector<1x128xf32>
    %cst = arith.constant dense<0.000000e+00> : vector<8xf32>
    %5 = vector.multi_reduction <add>, %2, %cst [1] : vector<8x128xf32> to vector<8xf32>
    %6 = vector.shape_cast %5 : vector<8xf32> to vector<8x1xf32>
    %cst_6 = arith.constant 1.280000e+02 : f32
    %7 = vector.broadcast %cst_6 : f32 to vector<8x1xf32>
    %8 = arith.divf %6, %7 : vector<8x1xf32>
    %9 = vector.broadcast %8 : vector<8x1xf32> to vector<8x128xf32>
    %10 = arith.subf %2, %9 : vector<8x128xf32>
    %11 = arith.mulf %10, %10 : vector<8x128xf32>
    %cst_7 = arith.constant dense<0.000000e+00> : vector<8xf32>
    %12 = vector.multi_reduction <add>, %11, %cst_7 [1] : vector<8x128xf32> to vector<8xf32>
    %13 = vector.shape_cast %12 : vector<8xf32> to vector<8x1xf32>
    %cst_8 = arith.constant 1.280000e+02 : f32
    %14 = vector.broadcast %cst_8 : f32 to vector<8x1xf32>
    %15 = arith.divf %13, %14 : vector<8x1xf32>
    %cst_9 = arith.constant 9.99999996E-13 : f32
    %16 = vector.broadcast %cst_9 : f32 to vector<8x1xf32>
    %17 = arith.addf %15, %16 : vector<8x1xf32>
    %18 = math.rsqrt %17 : vector<8x1xf32>
    %19 = vector.broadcast %18 : vector<8x1xf32> to vector<8x128xf32>
    %20 = arith.mulf %10, %19 : vector<8x128xf32>
    %21 = vector.broadcast %3 : vector<1x128xf32> to vector<8x128xf32>
    %22 = arith.mulf %20, %21 : vector<8x128xf32>
    %23 = vector.broadcast %4 : vector<1x128xf32> to vector<8x128xf32>
    %24 = arith.addf %22, %23 : vector<8x128xf32>
    %25 = arith.truncf %24 : vector<8x128xf32> to vector<8x128xbf16>
    %c0_10 = arith.constant 0 : index
    %c0_11 = arith.constant 0 : index
    %c0_12 = arith.constant 0 : index
    %26 = vector.load %arg5[%c0_10, %c0_11, %c0_12] : memref<1x8x128xbf16, #tpu.memory_space<vmem>>, vector<1x8x128xbf16>
    %27 = vector.shape_cast %26 : vector<1x8x128xbf16> to vector<8x128xbf16>
    %28 = vector.shape_cast %25 : vector<8x128xbf16> to vector<1x8x128xbf16>
    tpu.vector_store %arg5[%c0_10, %c0_11, %c0_12], %28 {strides = array<i32>} : memref<1x8x128xbf16, #tpu.memory_space<vmem>>, vector<1x8x128xbf16>,
    return
  }
  func.func @transform_0(%arg0: i32, %arg1: i32) -> (i32, i32, i32) {
    %c0_i32 = arith.constant 0 : i32
    %c0_i32_0 = arith.constant 0 : i32
    return %arg0, %arg1, %c0_i32 : i32, i32, i32
  }
  func.func @transform_1(%arg0: i32, %arg1: i32) -> (i32, i32) {
    %c0_i32 = arith.constant 0 : i32
    %c0_i32_0 = arith.constant 0 : i32
    %c0_i32_1 = arith.constant 0 : i32
    return %c0_i32, %c0_i32_0 : i32, i32
  }
  func.func @transform_2(%arg0: i32, %arg1: i32) -> (i32, i32) {
    %c0_i32 = arith.constant 0 : i32
    %c0_i32_0 = arith.constant 0 : i32
    %c0_i32_1 = arith.constant 0 : i32
    return %c0_i32, %c0_i32_0 : i32, i32
  }
  func.func @transform_3(%arg0: i32, %arg1: i32) -> (i32, i32, i32) {
    %c0_i32 = arith.constant 0 : i32
    %c0_i32_0 = arith.constant 0 : i32
    return %arg0, %arg1, %c0_i32 : i32, i32, i32
  }
}

</mosaic_0001>

<llo_original>
// kernel: tpu_custom_call.1
$region0: #{tpu_custom_call.1}
  #allocation0 [shape = 'u32[]', space=smem, size = 0x4, offset = 0x4, fixed_abs, tag = 'smem constant byte address 0x4 - core index']
  #allocation1 [shape = 'u32[72,128]{1,0:T(1,128)}', space=vmem, size = 0x9000, scoped, tag = 'internal scratch']
  %s0 = inlined_call_operand.hbm [shape: bf16[2,8,128], index: 0, kind: input, shape index: {}]
  %s1 = inlined_call_operand.hbm [shape: f32[1,128], index: 1, kind: input, shape index: {}]
  %s2 = inlined_call_operand.vmem [shape: f32[1,128], index: 2, kind: input, shape index: {}]
  %s3 = inlined_call_operand.hbm [shape: bf16[2,8,128], index: 3, kind: output, shape index: {}]
  %s4 = sld [smem:[#allocation0]]
  $region53: #{tpu_custom_call.1} parent=0
    _
  %s6 = ssub.s32 1, %s4
  %s7 = scalar_select 0, %s6, %s4
  $region1: #{tpu_custom_call.1} parent=0
    #allocation2 [shape = 'u8[4096]{0}', space=vmem, size = 0x1000, scoped, tag = 'input window, operand 0']
    #allocation3 [shape = 's32[2]{0}', space=sflag, size = 0x8, scoped, tag = 'scoped memory for tpu_custom_call.1']
    #allocation4 [shape = 's32[2]{0}', space=sflag, size = 0x8, scoped, tag = 'scoped memory for tpu_custom_call.1']
    #allocation5 [shape = 'u8[512]{0}', space=vmem, size = 0x400, scoped, tag = 'input window, operand 1, single buffered']
    #allocation6 [shape = 's32[1]{0}', space=sflag, size = 0x4, scoped, tag = 'scoped memory for tpu_custom_call.1']
    #allocation7 [shape = 'u8[4096]{0}', space=vmem, size = 0x1000, scoped, tag = 'output window, operand 0']
    %8 = vsyncpa [#allocation3], 0
    %s9 = scalar_lea.sflag [#allocation3], 1
    %10 = vsyncpa %s9, 0
    %11 = vsyncpa [#allocation6], 0
    %12 = vsyncpa [#allocation4], 0
    %s13 = scalar_lea.sflag [#allocation4], 1
    %14 = vsyncpa %s13, 0
    loop: start=0, step=1, limit=4
    $region2: #{tpu_custom_call.1} parent=1 // loop_pre_header
      _
    $region3: #{tpu_custom_call.1} parent=1 // loop_header
      %s16 = sphi 0, %s20
      %p17 = scmp.ge.s32.totalorder %s16, 4
      %s23 = sphi 0, %s35
      %s24 = sphi 0, %s31
      %s25 = sphi 0, %s23
      %s26 = sphi 0, %s24
      %s27 = sphi 0, %s25
      %s28 = sphi 0, %s26
      %s40 = sphi 0, %s42
      %s43 = sphi 0, %s40
      %s44 = sphi 0, %s43
      %s60 = sphi 0, %s44
      %s64 = sphi 0, %s64
      %s66 = sphi 0, %s64
      %s67 = sphi 0, %s66
      %s81 = sphi 0, %s67
      %s85 = sphi 0, %s85
      %s87 = sphi 0, %s85
      %s88 = sphi 0, %s87
      %s102 = sphi 0, %s88
      %s110 = sphi 0, %s112
      %s113 = sphi 0, %s110
      %s114 = sphi 0, %s113
      %s130 = sphi 0, %s114
    $region4: #{tpu_custom_call.1} parent=1 // loop_header_branch
      %19 = sbr.rel (%p17) target = $region8
    $region5: #{tpu_custom_call.1} parent=1 // loop_body
      %s21 = ssub.s32 %s16, 1
      %s22 = ssub.s32 %s16, 2
      %s29 = sadd.s32 1, %s24
      %p30 = scmp.ge.s32.totalorder %s29, 1
      %s31 = scalar_select %p30, 0, %s29
      %s32 = sadd.s32 1, %s23
      %s33 = scalar_select %p30, %s32, %s23
      %p34 = scmp.ge.s32.totalorder %s33, 2
      %s35 = scalar_select %p34, 0, %s33
      %s36 = ssub.s32 %s23, %s35
      %s37 = ssub.s32 %s24, %s31
      %s38 = sor.u32 %s36, %s37
      %p39 = scmp.eq.s32.totalorder %s38, 0
      %s41 = sadd.s32 %s40, 1
      %s42 = scalar_select %p39, %s40, %s41
      %p45 = pneg %p39
      %p46 = scmp.eq.s32.totalorder %s16, 1
      %p47 = por %p45, %p46
      %p48 = scmp.ne.s32.totalorder %s40, %s43
      %p49 = scmp.eq.s32.totalorder %s16, 0
      %p50 = por %p48, %p49
      %p51 = scmp.ne.s32.totalorder %s40, %s43
      %p52 = scmp.eq.s32.totalorder %s21, 1
      %p53 = por %p51, %p52
      %p54 = scmp.ne.s32.totalorder %s43, %s44
      %p55 = scmp.eq.s32.totalorder %s21, 0
      %p56 = por %p54, %p55
      %p57 = scmp.ne.s32.totalorder %s43, %s44
      %p58 = scmp.eq.s32.totalorder %s22, 1
      %p59 = por %p57, %p58
      %p61 = scmp.ne.s32.totalorder %s44, %s60
      %p62 = scmp.eq.s32.totalorder %s22, 0
      %p63 = por %p61, %p62
      %s65 = sadd.s32 %s64, 1
      %p68 = scmp.eq.s32.totalorder %s16, 1
      %p69 = scmp.ne.s32.totalorder %s64, %s66
      %p70 = scmp.eq.s32.totalorder %s16, 0
      %p71 = por %p69, %p70
      %p72 = scmp.ne.s32.totalorder %s64, %s66
      %p73 = scmp.eq.s32.totalorder %s21, 1
      %p74 = por %p72, %p73
      %p75 = scmp.ne.s32.totalorder %s66, %s67
      %p76 = scmp.eq.s32.totalorder %s21, 0
      %p77 = por %p75, %p76
      %p78 = scmp.ne.s32.totalorder %s66, %s67
      %p79 = scmp.eq.s32.totalorder %s22, 1
      %p80 = por %p78, %p79
      %p82 = scmp.ne.s32.totalorder %s67, %s81
      %p83 = scmp.eq.s32.totalorder %s22, 0
      %p84 = por %p82, %p83
      %s86 = sadd.s32 %s85, 1
      %p89 = scmp.eq.s32.totalorder %s16, 1
      %p90 = scmp.ne.s32.totalorder %s85, %s87
      %p91 = scmp.eq.s32.totalorder %s16, 0
      %p92 = por %p90, %p91
      %p93 = scmp.ne.s32.totalorder %s85, %s87
      %p94 = scmp.eq.s32.totalorder %s21, 1
      %p95 = por %p93, %p94
      %p96 = scmp.ne.s32.totalorder %s87, %s88
      %p97 = scmp.eq.s32.totalorder %s21, 0
      %p98 = por %p96, %p97
      %p99 = scmp.ne.s32.totalorder %s87, %s88
      %p100 = scmp.eq.s32.totalorder %s22, 1
      %p101 = por %p99, %p100
      %p103 = scmp.ne.s32.totalorder %s88, %s102
      %p104 = scmp.eq.s32.totalorder %s22, 0
      %p105 = por %p103, %p104
      %s106 = ssub.s32 %s23, %s35
      %s107 = ssub.s32 %s24, %s31
      %s108 = sor.u32 %s106, %s107
      %p109 = scmp.eq.s32.totalorder %s108, 0
      %s111 = sadd.s32 %s110, 1
      %s112 = scalar_select %p109, %s110, %s111
      %p115 = pneg %p109
      %p116 = scmp.eq.s32.totalorder %s16, 1
      %p117 = por %p115, %p116
      %p118 = scmp.ne.s32.totalorder %s110, %s113
      %p119 = scmp.eq.s32.totalorder %s16, 0
      %p120 = por %p118, %p119
      %p121 = scmp.ne.s32.totalorder %s110, %s113
      %p122 = scmp.eq.s32.totalorder %s21, 1
      %p123 = por %p121, %p122
      %p124 = scmp.ne.s32.totalorder %s113, %s114
      %p125 = scmp.eq.s32.totalorder %s21, 0
      %p126 = por %p124, %p125
      %p127 = scmp.ne.s32.totalorder %s113, %s114
      %p128 = scmp.eq.s32.totalorder %s22, 1
      %p129 = por %p127, %p128
      %p131 = scmp.ne.s32.totalorder %s114, %s130
      %p132 = scmp.eq.s32.totalorder %s22, 0
      %p133 = por %p131, %p132
      %p134 = scmp.le.s32.totalorder 1, %s16
      %p135 = scmp.lt.s32.totalorder %s16, 3
      %p136 = pnand %p134, %p135
      %p137 = pneg %p136
      // Predicated region
      $region9: #{tpu_custom_call.1} parent=5 // pred_check
        _
      $region10: #{tpu_custom_call.1} parent=5 // pred_check_branch
        %139 = sbr.rel (%p136) target = $region12
      $region11: #{tpu_custom_call.1} parent=5 // pred_region
        %s140 = ssub.s32 %s16, 1
        // Predicated region
        $region13: #{tpu_custom_call.1} parent=11 // pred_check
          %p141 = pneg %p77
        $region14: #{tpu_custom_call.1} parent=11 // pred_check_branch
          %143 = sbr.rel (%p141) target = $region16
        $region15: #{tpu_custom_call.1} parent=11 // pred_region
          %145 = vsyncadd [#allocation6], 0
          %s147 = sshll.u32 %s1, 4
          %s148 = int_to_ptr.hbm [resolvable:$true] %s147
          %s149 = sshll.u32 [#allocation5], 4
          %s150 = int_to_ptr.vmem [resolvable:$true] %s149
          %152 = dma.hbm_to_vmem [thread:$0]  %s148, 16, %s150, [#allocation6]
        $region16: #{tpu_custom_call.1} parent=11 // pred_fallthru
          _
        // Predicated region
        $region17: #{tpu_custom_call.1} parent=11 // pred_check
          %p153 = pneg %p98
        $region18: #{tpu_custom_call.1} parent=11 // pred_check_branch
          %155 = sbr.rel (%p153) target = $region20
        $region19: #{tpu_custom_call.1} parent=11 // pred_region
          _
        $region20: #{tpu_custom_call.1} parent=11 // pred_fallthru
          _
      $region12: #{tpu_custom_call.1} parent=5 // pred_fallthru
        _
      %p156 = scmp.lt.s32.totalorder %s16, 2
      // Predicated region
      $region21: #{tpu_custom_call.1} parent=5 // pred_check
        %p157 = pneg %p156
      $region22: #{tpu_custom_call.1} parent=5 // pred_check_branch
        %159 = sbr.rel (%p157) target = $region24
      $region23: #{tpu_custom_call.1} parent=5 // pred_region
        // Predicated region
        $region25: #{tpu_custom_call.1} parent=23 // pred_check
          %p160 = pneg %p50
        $region26: #{tpu_custom_call.1} parent=23 // pred_check_branch
          %162 = sbr.rel (%p160) target = $region28
        $region27: #{tpu_custom_call.1} parent=23 // pred_region
          %s163 = sand.u32 %s40, 1
          %s164 = scalar_lea.sflag [#allocation3], %s163
          %s165 = sand.u32 %s40, 1
          %s166 = smul.addr %s165, 4
          %s167 = scalar_lea.vmem [#allocation2], %s166
          %169 = vsyncadd %s164, 0
          %s170 = sadd.s32 %s24, %s23
          %s171 = smul.addr %s170, 4
          %s172 = scalar_lea.hbm %s0, %s171
          %s174 = sshll.u32 %s172, 4
          %s175 = int_to_ptr.hbm [resolvable:$true] %s174
          %s176 = sshll.u32 %s167, 4
          %s177 = int_to_ptr.vmem [resolvable:$true] %s176
          %179 = dma.hbm_to_vmem [thread:$0]  %s175, 64, %s177, %s164
        $region28: #{tpu_custom_call.1} parent=23 // pred_fallthru
          _
      $region24: #{tpu_custom_call.1} parent=5 // pred_fallthru
        _
      %p180 = scmp.le.s32.totalorder 1, %s16
      %p181 = scmp.lt.s32.totalorder %s16, 3
      %p182 = pnand %p180, %p181
      %p183 = pneg %p182
      // Predicated region
      $region29: #{tpu_custom_call.1} parent=5 // pred_check
        _
      $region30: #{tpu_custom_call.1} parent=5 // pred_check_branch
        %185 = sbr.rel (%p182) target = $region32
      $region31: #{tpu_custom_call.1} parent=5 // pred_region
        %s186 = ssub.s32 %s16, 1
        %s187 = sand.u32 %s43, 1
        %s188 = scalar_lea.sflag [#allocation3], %s187
        %s189 = sand.u32 %s43, 1
        %s190 = smul.addr %s189, 4
        %s191 = scalar_lea.vmem [#allocation2], %s190
        // Predicated region
        $region33: #{tpu_custom_call.1} parent=31 // pred_check
          %p192 = pneg %p56
        $region34: #{tpu_custom_call.1} parent=31 // pred_check_branch
          %194 = sbr.rel (%p192) target = $region36
        $region35: #{tpu_custom_call.1} parent=31 // pred_region
          %196 = dma.done %s188, 64
        $region36: #{tpu_custom_call.1} parent=31 // pred_fallthru
          _
        // Predicated region
        $region37: #{tpu_custom_call.1} parent=31 // pred_check
          %p197 = pneg %p77
        $region38: #{tpu_custom_call.1} parent=31 // pred_check_branch
          %199 = sbr.rel (%p197) target = $region40
        $region39: #{tpu_custom_call.1} parent=31 // pred_region
          %201 = dma.done [#allocation6], 16
        $region40: #{tpu_custom_call.1} parent=31 // pred_fallthru
          _
        %s202 = sand.u32 %s43, 1
        %s203 = scalar_lea.sflag [#allocation3], %s202
        %s204 = sand.u32 %s43, 1
        %s205 = smul.addr %s204, 4
        %s206 = scalar_lea.vmem [#allocation2], %s205
        %p207 = pneg %p56
        %p208 = pneg %p53
        %p209 = pneg %p77
        %p210 = pneg %p74
        %p211 = pneg %p98
        %p212 = pneg %p95
        %p213 = pneg %p126
        %p214 = pneg %p123
        %s215 = sand.u32 %s113, 1
        %s216 = scalar_lea.sflag [#allocation4], %s215
        %s217 = sand.u32 %s113, 1
        %s218 = smul.addr %s217, 4
        %s219 = scalar_lea.vmem [#allocation7], %s218
        %v220 = vld [vmem:[%s191] sm:$0xf]
        %v221 = vunpack.c.l.bf16 %v220
        %v222 = vld [vmem:[#allocation5] sm:$0x1]
        %v223 = vld [vmem:[%s2] sm:$0x1]
        %224 = vadd.xlane.f32.xlu0 %v221
        %v225 = vpop.xlane.xlu0 %224
        %v226 = vrcp.pop 128.0
        %v227 = vmul.f32 128.0, %v226
        %v228 = vsub.f32 1.0, %v227
        %v229 = vmul.f32 %v226, %v228
        %v230 = vadd.f32 %v226, %v229
        %vm231 = vweird.f32 %v226
        %v232 = vsel %vm231, %v226, %v230
        %v233 = vmul.f32 %v225, %v232
        %v234 = vsub.f32 %v221, %v233
        %v235 = vmul.f32 %v234, %v234
        %236 = vadd.xlane.f32.xlu0 %v235
        %v237 = vpop.xlane.xlu0 %236
        %v238 = vmul.f32 %v237, %v232
        %v239 = vadd.f32 %v238, 1e-12
        %v240 = vrsqrt.pop %v239
        %v241 = vmul.f32 %v240, %v239
        %v242 = vmul.f32 %v241, %v240
        %v243 = vmul.f32 0.5, %v242
        %v244 = vsub.f32 1.5, %v243
        %v245 = vmul.f32 %v240, %v244
        %vm246 = vweird.f32 %v239
        %vm247 = vweird.f32 %v240
        %vm248 = vmor %vm246, %vm247
        %v249 = vsel %vm248, %v240, %v245
        %v250 = vmul.f32 %v234, %v249
        %v252 = vperm.slane %v222, 0
        %v254 = vmul.f32 %v250, %v252
        %v256 = vperm.slane %v223, 0
        %v258 = vadd.f32 %v254, %v256
        %v259 = vpack.c.bf16 %v258, %v258
        %260 = vst [vmem:[%s219] sm:$0xf] %v259
        %s261 = sand.u32 %s113, 1
        %s262 = scalar_lea.sflag [#allocation4], %s261
        %s263 = sand.u32 %s113, 1
        %s264 = smul.addr %s263, 4
        %s265 = scalar_lea.vmem [#allocation7], %s264
        // Predicated region
        $region41: #{tpu_custom_call.1} parent=31 // pred_check
          %p266 = pneg %p123
        $region42: #{tpu_custom_call.1} parent=31 // pred_check_branch
          %268 = sbr.rel (%p266) target = $region44
        $region43: #{tpu_custom_call.1} parent=31 // pred_region
          %270 = vsyncadd %s262, 0
          %s271 = sadd.s32 %s26, %s25
          %s272 = smul.addr %s271, 4
          %s273 = scalar_lea.hbm %s3, %s272
          %s275 = sshll.u32 %s265, 4
          %s276 = int_to_ptr.vmem [resolvable:$true] %s275
          %s277 = sshll.u32 %s273, 4
          %s278 = int_to_ptr.hbm [resolvable:$true] %s277
          %280 = dma.vmem_to_hbm [thread:$0]  %s276, 64, %s278, %s262
        $region44: #{tpu_custom_call.1} parent=31 // pred_fallthru
          _
      $region32: #{tpu_custom_call.1} parent=5 // pred_fallthru
        _
      %p281 = scmp.le.s32.totalorder 2, %s16
      // Predicated region
      $region45: #{tpu_custom_call.1} parent=5 // pred_check
        %p282 = pneg %p281
      $region46: #{tpu_custom_call.1} parent=5 // pred_check_branch
        %284 = sbr.rel (%p282) target = $region48
      $region47: #{tpu_custom_call.1} parent=5 // pred_region
        %s285 = ssub.s32 %s16, 2
        // Predicated region
        $region49: #{tpu_custom_call.1} parent=47 // pred_check
          %p286 = pneg %p129
        $region50: #{tpu_custom_call.1} parent=47 // pred_check_branch
          %288 = sbr.rel (%p286) target = $region52
        $region51: #{tpu_custom_call.1} parent=47 // pred_region
          %s289 = sand.u32 %s114, 1
          %s290 = scalar_lea.sflag [#allocation4], %s289
          %s291 = sand.u32 %s114, 1
          %s292 = smul.addr %s291, 4
          %s293 = scalar_lea.vmem [#allocation7], %s292
          %295 = dma.done %s290, 64
        $region52: #{tpu_custom_call.1} parent=47 // pred_fallthru
          _
      $region48: #{tpu_custom_call.1} parent=5 // pred_fallthru
        _
    $region6: #{tpu_custom_call.1} parent=1 // loop_footer
      %s20 = sadd.s32 1, %s16
    $region7: #{tpu_custom_call.1} parent=1 // loop_footer_branch
      %15 = sbr.rel target = $region3
    $region8: #{tpu_custom_call.1} parent=1 // loop_exit
      _
    %296 = vsyncpa [#allocation3], 1
    %s297 = scalar_lea.sflag [#allocation3], 1
    %298 = vsyncpa %s297, 1
    %299 = vsyncpa [#allocation6], 1
    %300 = vsyncpa [#allocation4], 1
    %s301 = scalar_lea.sflag [#allocation4], 1
    %302 = vsyncpa %s301, 1

</llo_original>
